<compile_context>
chip_gen: v7x
topology: tpu7x:2x2x1
jax: 0.10.0
libtpu: 0.0.40
codegen_flags: <defaults>
</compile_context>

<pallas_src>
import functools
import math

import jax
import jax.numpy as jnp
import numpy as np
from jax.experimental import pallas as pl
from jax.experimental.pallas import tpu as pltpu

BN_EPS = 1e-5          # nn.BatchNorm2d default
LEAKY_SLOPE = 0.01     # nn.LeakyReLU default
LANE = 128


def _round_up(x, m):
    return (x + m - 1) // m * m


# --------------------------- Kernel 1: 1x1 conv (tiled matmul + bias) ----------
def _mm_bias_kernel(x_ref, w_ref, b_ref, o_ref):
    o_ref[...] = (
        jnp.dot(x_ref[...], w_ref[...], preferred_element_type=jnp.float32)
        + b_ref[...]
    )


def _conv1x1(x_flat, w, b, *, tm):
    """x_flat: (M, Cin), w: (Cin, Cp), b: (1, Cp) -> (M, Cp) f32."""
    M, Cin = x_flat.shape
    Cp = w.shape[1]
    Mp = _round_up(M, tm)
    if Mp != M:
        x_flat = jnp.pad(x_flat, ((0, Mp - M), (0, 0)))
    out = pl.pallas_call(
        _mm_bias_kernel,
        out_shape=jax.ShapeDtypeStruct((Mp, Cp), jnp.float32),
        grid=(Mp // tm,),
        in_specs=[
            pl.BlockSpec((tm, Cin), lambda i: (i, 0)),
            pl.BlockSpec((Cin, Cp), lambda i: (0, 0)),
            pl.BlockSpec((1, Cp), lambda i: (0, 0)),
        ],
        out_specs=pl.BlockSpec((tm, Cp), lambda i: (i, 0)),
        compiler_params=pltpu.CompilerParams(
            dimension_semantics=("parallel",)),
    )(x_flat, w, b)
    return out[:M]


# --------------------------- in-kernel 3x3 conv helper --------------------------
def _conv3x3_acc(x, w9_ref, H, W):
    """x: (H+2, W+2, Cin) spatially padded; w9_ref: (9, Cin, Cout)."""
    Cout = w9_ref.shape[-1]
    acc = jnp.zeros((H * W, Cout), jnp.float32)
    for k in range(9):
        dy, dx = divmod(k, 3)
        win = x[dy:dy + H, dx:dx + W, :].reshape(H * W, x.shape[-1])
        acc = acc + jnp.dot(win, w9_ref[k], preferred_element_type=jnp.float32)
    return acc


# --------------------------- Kernel 2: upconv2 + conv2(edge) + add --------------
def _upconv_add_kernel(semp_ref, edge_ref, w9_ref, w2_ref, b_ref, o_ref, *, H, W):
    x = semp_ref[0]                                   # (H+2, W+2, Cp)
    acc = _conv3x3_acc(x, w9_ref, H, W)               # (H*W, Cp)
    e = edge_ref[0]                                   # (H*W, Ce)
    acc = acc + jnp.dot(e, w2_ref[...], preferred_element_type=jnp.float32)
    o_ref[0] = acc + b_ref[...]                       # fused upconv2_b + conv2_b


# --------------------------- Kernel 3: conv3 + BN(eval) + LeakyReLU -------------
def _conv_bn_lrelu_kernel(xp_ref, w9_ref, scale_ref, shift_ref, o_ref, *, H, W):
    x = xp_ref[0]                                     # (H+2, W+2, Cp)
    acc = _conv3x3_acc(x, w9_ref, H, W)               # (H*W, Cp)
    y = acc * scale_ref[...] + shift_ref[...]         # BN + conv3 bias folded in
    o_ref[0] = jnp.where(y > 0, y, LEAKY_SLOPE * y)


# --------------------------- plain-JAX glue: bilinear upsample ------------------
def _bilinear_upsample_nhwc(x, scale):
    """PyTorch nn.Upsample(mode='bilinear', align_corners=False) semantics."""
    B, H, W, C = x.shape
    Ho, Wo = H * scale, W * scale

    def src_idx(out_size, in_size):
        i = jnp.arange(out_size, dtype=jnp.float32)
        s = jnp.maximum((i + 0.5) * (in_size / out_size) - 0.5, 0.0)
        i0 = jnp.clip(jnp.floor(s).astype(jnp.int32), 0, in_size - 1)
        i1 = jnp.minimum(i0 + 1, in_size - 1)
        lam = s - i0.astype(jnp.float32)
        return i0, i1, lam

    h0, h1, lh = src_idx(Ho, H)
    w0, w1, lw = src_idx(Wo, W)
    r = (x[:, h0] * (1.0 - lh)[None, :, None, None]
         + x[:, h1] * lh[None, :, None, None])
    out = (r[:, :, w0] * (1.0 - lw)[None, None, :, None]
           + r[:, :, w1] * lw[None, None, :, None])
    return out


# --------------------------- full forward ---------------------------------------
def semantic_add_edge(sem, edge, params, *, stride=2):
    (w1, b1, w2, b2, wu, bu, w3, b3, gamma, beta, mean, var) = params
    B, Cs, Hs, Ws = sem.shape
    _, Ce, H, W = edge.shape
    Co = w1.shape[0]
    assert H == Hs * stride and W == Ws * stride

    Cp = _round_up(Co, LANE)          # lane-dense channel padding
    Csp = _round_up(Cs, 8)
    Cep = _round_up(Ce, 8)

    # ---- fold / pad parameters (host-side glue, exact) ----
    w1m = jnp.pad(w1.reshape(Co, Cs).T, ((0, Csp - Cs), (0, Cp - Co)))
    b1m = jnp.pad(b1.reshape(1, Co), ((0, 0), (0, Cp - Co)))
    w2m = jnp.pad(w2.reshape(Co, Ce).T, ((0, Cep - Ce), (0, Cp - Co)))
    wu9 = jnp.pad(wu.transpose(2, 3, 1, 0).reshape(9, Co, Co),
                  ((0, 0), (0, Cp - Co), (0, Cp - Co)))
    w39 = jnp.pad(w3.transpose(2, 3, 1, 0).reshape(9, Co, Co),
                  ((0, 0), (0, Cp - Co), (0, Cp - Co)))
    b_add = jnp.pad((bu + b2).reshape(1, Co), ((0, 0), (0, Cp - Co)))
    scale = gamma * jax.lax.rsqrt(var + BN_EPS)
    shift = beta + (b3 - mean) * scale
    scale_p = jnp.pad(scale.reshape(1, Co), ((0, 0), (0, Cp - Co)))
    shift_p = jnp.pad(shift.reshape(1, Co), ((0, 0), (0, Cp - Co)))

    # ---- conv1 (1x1) at low resolution: row-tiled matmul kernel ----
    sem_flat = jnp.pad(sem.transpose(0, 2, 3, 1).reshape(B * Hs * Ws, Cs),
                       ((0, 0), (0, Csp - Cs)))
    tm = min(512, _round_up(B * Hs * Ws, 8))
    sem1 = _conv1x1(sem_flat, w1m, b1m, tm=tm).reshape(B, Hs, Ws, Cp)

    # ---- bilinear upsample + spatial zero-pad for the 3x3 conv ----
    sem_up = _bilinear_upsample_nhwc(sem1, stride)             # (B, H, W, Cp)
    sem_up_p = jnp.pad(sem_up, ((0, 0), (1, 1), (1, 1), (0, 0)))

    edge_flat = jnp.pad(edge.transpose(0, 2, 3, 1),
                        ((0, 0), (0, 0), (0, 0), (0, Cep - Ce))
                        ).reshape(B, H * W, Cep)

    # ---- kernel 2: upconv2(sem_up) + conv2(edge) + biases ----
    s = pl.pallas_call(
        functools.partial(_upconv_add_kernel, H=H, W=W),
        out_shape=jax.ShapeDtypeStruct((B, H * W, Cp), jnp.float32),
        grid=(B,),
        in_specs=[
            pl.BlockSpec((1, H + 2, W + 2, Cp), lambda b: (b, 0, 0, 0)),
            pl.BlockSpec((1, H * W, Cep), lambda b: (b, 0, 0)),
            pl.BlockSpec((9, Cp, Cp), lambda b: (0, 0, 0)),
            pl.BlockSpec((Cep, Cp), lambda b: (0, 0)),
            pl.BlockSpec((1, Cp), lambda b: (0, 0)),
        ],
        out_specs=pl.BlockSpec((1, H * W, Cp), lambda b: (b, 0, 0)),
        compiler_params=pltpu.CompilerParams(
            dimension_semantics=("parallel",)),
    )(sem_up_p, edge_flat, wu9, w2m, b_add)

    s_p = jnp.pad(s.reshape(B, H, W, Cp), ((0, 0), (1, 1), (1, 1), (0, 0)))

    # ---- kernel 3: conv3 + BatchNorm(eval) + LeakyReLU ----
    out = pl.pallas_call(
        functools.partial(_conv_bn_lrelu_kernel, H=H, W=W),
        out_shape=jax.ShapeDtypeStruct((B, H * W, Cp), jnp.float32),
        grid=(B,),
        in_specs=[
            pl.BlockSpec((1, H + 2, W + 2, Cp), lambda b: (b, 0, 0, 0)),
            pl.BlockSpec((9, Cp, Cp), lambda b: (0, 0, 0)),
            pl.BlockSpec((1, Cp), lambda b: (0, 0)),
            pl.BlockSpec((1, Cp), lambda b: (0, 0)),
        ],
        out_specs=pl.BlockSpec((1, H * W, Cp), lambda b: (b, 0, 0)),
        compiler_params=pltpu.CompilerParams(
            dimension_semantics=("parallel",)),
    )(s_p, w39, scale_p, shift_p)

    # drop channel padding, back to NCHW like the PyTorch module
    return out.reshape(B, H, W, Cp)[..., :Co].transpose(0, 3, 1, 2)


# --------------------------- pure-JAX reference ----------------------------------
def _reference(sem, edge, params, *, stride=2):
    (w1, b1, w2, b2, wu, bu, w3, b3, gamma, beta, mean, var) = params

    def conv(x, w, b, pad):
        y = jax.lax.conv_general_dilated(
            x, w, window_strides=(1, 1),
            padding=((pad, pad), (pad, pad)),
            dimension_numbers=("NCHW", "OIHW", "NCHW"))
        return y + b.reshape(1, -1, 1, 1)

    y1 = conv(sem, w1, b1, 0)
    y2 = conv(edge, w2, b2, 0)
    y1_up = _bilinear_upsample_nhwc(
        y1.transpose(0, 2, 3, 1), stride).transpose(0, 3, 1, 2)
    s = conv(y1_up, wu, bu, 1) + y2
    y3 = conv(s, w3, b3, 1)
    sc = (gamma * jax.lax.rsqrt(var + BN_EPS)).reshape(1, -1, 1, 1)
    yb = (y3 - mean.reshape(1, -1, 1, 1)) * sc + beta.reshape(1, -1, 1, 1)
    return jnp.where(yb > 0, yb, LEAKY_SLOPE * yb)


if __name__ == "__main__":
    # Small shapes consistent with the module: sem 8x8 with 4 channels,
    # edge 16x16 with 8 channels, out_channel 32, stride 2.
    B, Cs, Ce, Co = 2, 4, 8, 32
    Hs = Ws = 8
    stride = 2
    H = Hs * stride

    key = jax.random.PRNGKey(0)
    keys = jax.random.split(key, 12)
    sem = jax.random.normal(keys[0], (B, Cs, Hs, Ws), jnp.float32)
    edge = jax.random.normal(keys[1], (B, Ce, H, H), jnp.float32)

    def kaiming(k, shape, fan_in):
        return jax.random.normal(k, shape, jnp.float32) * math.sqrt(2.0 / fan_in)

    w1 = kaiming(keys[2], (Co, Cs, 1, 1), Cs)
    b1 = 0.1 * jax.random.normal(keys[3], (Co,), jnp.float32)
    w2 = kaiming(keys[4], (Co, Ce, 1, 1), Ce)
    b2 = 0.1 * jax.random.normal(keys[5], (Co,), jnp.float32)
    wu = kaiming(keys[6], (Co, Co, 3, 3), Co * 9)
    bu = 0.1 * jax.random.normal(keys[7], (Co,), jnp.float32)
    w3 = kaiming(keys[8], (Co, Co, 3, 3), Co * 9)
    b3 = 0.1 * jax.random.normal(keys[9], (Co,), jnp.float32)
    gamma = 1.0 + 0.1 * jax.random.normal(keys[10], (Co,), jnp.float32)
    beta = 0.1 * jax.random.normal(keys[11], (Co,), jnp.float32)
    mean = 0.05 * jnp.arange(Co, dtype=jnp.float32)
    var = 1.0 + 0.01 * jnp.arange(Co, dtype=jnp.float32)

    params = (w1, b1, w2, b2, wu, bu, w3, b3, gamma, beta, mean, var)

    out = semantic_add_edge(sem, edge, params, stride=stride)
    out = jax.block_until_ready(out)

    ref = _reference(sem, edge, params, stride=stride)
    assert out.shape == (B, Co, H, H)
    np.testing.assert_allclose(np.asarray(out), np.asarray(ref),
                               atol=2e-3, rtol=2e-3)
    print("KERNEL_OK")
</pallas_src>

<mosaic_0001>
module attributes {stable_mosaic.version = 11 : i64} {
  func.func @_mm_bias_kernel(%arg0: i32, %arg1: memref<128x8xf32, #tpu.memory_space<vmem>>, %arg2: memref<8x128xf32, #tpu.memory_space<vmem>>, %arg3: memref<1x128xf32, #tpu.memory_space<vmem>>, %arg4: memref<128x128xf32, #tpu.memory_space<vmem>>) attributes {dimension_semantics = [#tpu.dimension_semantics<parallel>], iteration_bounds = array<i64: 1>, scalar_prefetch = 0 : i64, scratch_operands = 0 : i64, tpu.core_type = #tpu.core_type<tc>, window_params = [{transform_indices = @transform_0, window_bounds = array<i64: 128, 8>}, {pipeline_mode = #tpu.pipeline_mode<synchronous>, transform_indices = @transform_1, window_bounds = array<i64: 8, 128>}, {pipeline_mode = #tpu.pipeline_mode<synchronous>, transform_indices = @transform_2, window_bounds = array<i64: 1, 128>}, {transform_indices = @transform_3, window_bounds = array<i64: 128, 128>}]} {
    %c0 = arith.constant 0 : index
    %c0_0 = arith.constant 0 : index
    %0 = vector.load %arg1[%c0, %c0_0] : memref<128x8xf32, #tpu.memory_space<vmem>>, vector<128x8xf32>
    %c0_1 = arith.constant 0 : index
    %c0_2 = arith.constant 0 : index
    %1 = vector.load %arg2[%c0_1, %c0_2] : memref<8x128xf32, #tpu.memory_space<vmem>>, vector<8x128xf32>
    %cst = arith.constant dense<0.000000e+00> : vector<128x128xf32>
    %2 = tpu.matmul %0, %1, %cst {dimension_numbers = #tpu.dot_dimension_numbers<[1], [0], [0], [1], [0, 0, 1, 1], [], []>} : vector<128x8xf32>, vector<8x128xf32>, vector<128x128xf32> -> vector<128x128xf32>
    %c0_3 = arith.constant 0 : index
    %c0_4 = arith.constant 0 : index
    %3 = vector.load %arg3[%c0_3, %c0_4] : memref<1x128xf32, #tpu.memory_space<vmem>>, vector<1x128xf32>
    %4 = vector.broadcast %3 : vector<1x128xf32> to vector<128x128xf32>
    %5 = arith.addf %2, %4 : vector<128x128xf32>
    %c0_5 = arith.constant 0 : index
    %c0_6 = arith.constant 0 : index
    %6 = vector.load %arg4[%c0_5, %c0_6] : memref<128x128xf32, #tpu.memory_space<vmem>>, vector<128x128xf32>
    tpu.vector_store %arg4[%c0_5, %c0_6], %5 {strides = array<i32>} : memref<128x128xf32, #tpu.memory_space<vmem>>, vector<128x128xf32>,
    return
  }
  func.func @transform_0(%arg0: i32) -> (i32, i32) {
    %c0_i32 = arith.constant 0 : i32
    %c0_i32_0 = arith.constant 0 : i32
    return %arg0, %c0_i32 : i32, i32
  }
  func.func @transform_1(%arg0: i32) -> (i32, i32) {
    %c0_i32 = arith.constant 0 : i32
    %c0_i32_0 = arith.constant 0 : i32
    %c0_i32_1 = arith.constant 0 : i32
    return %c0_i32, %c0_i32_0 : i32, i32
  }
  func.func @transform_2(%arg0: i32) -> (i32, i32) {
    %c0_i32 = arith.constant 0 : i32
    %c0_i32_0 = arith.constant 0 : i32
    %c0_i32_1 = arith.constant 0 : i32
    return %c0_i32, %c0_i32_0 : i32, i32
  }
  func.func @transform_3(%arg0: i32) -> (i32, i32) {
    %c0_i32 = arith.constant 0 : i32
    %c0_i32_0 = arith.constant 0 : i32
    return %arg0, %c0_i32 : i32, i32
  }
}

</mosaic_0001>

<llo_original>
// kernel: tpu_custom_call.1
$region0: #{tpu_custom_call.1}
  #allocation0 [shape = 'u32[]', space=smem, size = 0x4, offset = 0x4, fixed_abs, tag = 'smem constant byte address 0x4 - core index']
  #allocation1 [shape = 'u32[144,128]{1,0:T(1,128)}', space=vmem, size = 0x12000, scoped, tag = 'internal scratch']
  %s0 = inlined_call_operand.vmem [shape: f32[128,8], index: 0, kind: input, shape index: {}]
  %s1 = inlined_call_operand.vmem [shape: f32[8,128], index: 1, kind: input, shape index: {}]
  %s2 = inlined_call_operand.vmem [shape: f32[1,128], index: 2, kind: input, shape index: {}]
  %s3 = inlined_call_operand.hbm [shape: f32[128,128], index: 3, kind: output, shape index: {}]
  %s4 = sld [smem:[#allocation0]]
  $region22: #{tpu_custom_call.1} parent=0
    _
  %s6 = ssub.s32 1, %s4
  %s7 = scalar_select 0, %s6, %s4
  $region1: #{tpu_custom_call.1} parent=0
    #allocation2 [shape = 'u8[65536]{0}', space=vmem, size = 0x10000, scoped, tag = 'output window, operand 0, single buffered']
    #allocation3 [shape = 's32[1]{0}', space=sflag, size = 0x4, scoped, tag = 'scoped memory for tpu_custom_call.1']
    %8 = vsyncpa [#allocation3], 0
    // Predicated region
    $region2: #{tpu_custom_call.1} parent=1 // pred_check
      _
    $region3: #{tpu_custom_call.1} parent=1 // pred_check_branch
      %10 = sbr.rel (0) target = $region5
    $region4: #{tpu_custom_call.1} parent=1 // pred_region
      _
    $region5: #{tpu_custom_call.1} parent=1 // pred_fallthru
      _
    // Predicated region
    $region6: #{tpu_custom_call.1} parent=1 // pred_check
      _
    $region7: #{tpu_custom_call.1} parent=1 // pred_check_branch
      %12 = sbr.rel (0) target = $region9
    $region8: #{tpu_custom_call.1} parent=1 // pred_region
      _
    $region9: #{tpu_custom_call.1} parent=1 // pred_fallthru
      _
    // Predicated region
    $region10: #{tpu_custom_call.1} parent=1 // pred_check
      _
    $region11: #{tpu_custom_call.1} parent=1 // pred_check_branch
      %14 = sbr.rel (0) target = $region13
    $region12: #{tpu_custom_call.1} parent=1 // pred_region
      _
    $region13: #{tpu_custom_call.1} parent=1 // pred_fallthru
      _
    %v15 = vld [vmem:[%s0] sm:$0xff]
    %v16 = vld [vmem:[%s0 + $0x8] sm:$0xff]
    %v17 = vld [vmem:[%s0 + $0x10] sm:$0xff]
    %v18 = vld [vmem:[%s0 + $0x18] sm:$0xff]
    %v19 = vld [vmem:[%s0 + $0x20] sm:$0xff]
    %v20 = vld [vmem:[%s0 + $0x28] sm:$0xff]
    %v21 = vld [vmem:[%s0 + $0x30] sm:$0xff]
    %v22 = vld [vmem:[%s0 + $0x38] sm:$0xff]
    %v23 = vld [vmem:[%s0 + $0x40] sm:$0xff]
    %v24 = vld [vmem:[%s0 + $0x48] sm:$0xff]
    %v25 = vld [vmem:[%s0 + $0x50] sm:$0xff]
    %v26 = vld [vmem:[%s0 + $0x58] sm:$0xff]
    %v27 = vld [vmem:[%s0 + $0x60] sm:$0xff]
    %v28 = vld [vmem:[%s0 + $0x68] sm:$0xff]
    %v29 = vld [vmem:[%s0 + $0x70] sm:$0xff]
    %v30 = vld [vmem:[%s0 + $0x78] sm:$0xff]
    %v31 = vld [vmem:[%s1] sm:$0xff]
    %v32 = vld [vmem:[%s2] sm:$0x1]
    %v34 = vlaneseq
    %v35 = vshrl.u32 %v34, 7
    %v36 = vsub.s32 0, %v35
    %v37 = vrot.slane %v32, %v36
    %vm39 = vcmask 64512
    %v41 = vsel %vm39, %v15, 0
    %v44 = vsel %vm39, %v16, 0
    %v47 = vsel %vm39, %v17, 0
    %v50 = vsel %vm39, %v18, 0
    %v53 = vsel %vm39, %v19, 0
    %v56 = vsel %vm39, %v20, 0
    %v59 = vsel %vm39, %v21, 0
    %v62 = vsel %vm39, %v22, 0
    %v65 = vsel %vm39, %v23, 0
    %v68 = vsel %vm39, %v24, 0
    %v71 = vsel %vm39, %v25, 0
    %v74 = vsel %vm39, %v26, 0
    %v77 = vsel %vm39, %v27, 0
    %v80 = vsel %vm39, %v28, 0
    %v83 = vsel %vm39, %v29, 0
    %v86 = vsel %vm39, %v30, 0
    %88 = vmatprep.subr.mxu0 0.0
    %89 = vmatpush1.msra.mxu0 %v31
    %90 = vmatprep.subr.mxu0 0.0
    %91 = vmatpush1.msra.mxu0 0.0
    %92 = vmatprep.subr.mxu0 0.0
    %93 = vmatpush1.msra.mxu0 0.0
    %94 = vmatprep.subr.mxu0 0.0
    %95 = vmatpush1.msra.mxu0 0.0
    %96 = vmatprep.subr.mxu0 0.0
    %97 = vmatpush1.msra.mxu0 0.0
    %98 = vmatprep.subr.mxu0 0.0
    %99 = vmatpush1.msra.mxu0 0.0
    %100 = vmatprep.subr.mxu0 0.0
    %101 = vmatpush1.msra.mxu0 0.0
    %102 = vmatprep.subr.mxu0 0.0
    %103 = vmatpush1.msra.mxu0 0.0
    %104 = vmatprep.subr.mxu0 0.0
    %105 = vmatpush1.msra.mxu0 0.0
    %106 = vmatprep.subr.mxu0 0.0
    %107 = vmatpush1.msra.mxu0 0.0
    %108 = vmatprep.subr.mxu0 0.0
    %109 = vmatpush1.msra.mxu0 0.0
    %110 = vmatprep.subr.mxu0 0.0
    %111 = vmatpush1.msra.mxu0 0.0
    %112 = vmatprep.subr.mxu0 0.0
    %113 = vmatpush1.msra.mxu0 0.0
    %114 = vmatprep.subr.mxu0 0.0
    %115 = vmatpush1.msra.mxu0 0.0
    %116 = vmatprep.subr.mxu0 0.0
    %117 = vmatpush1.msra.mxu0 0.0
    %118 = vmatprep.subr.mxu0 0.0
    %119 = vmatpush1.msra.mxu0 0.0
    %120 = vmatprep.subr.mxu0 0.0
    %121 = vmatpush1.msra.mxu0 0.0
    %122 = vmatprep.subr.mxu0 0.0
    %123 = vmatpush1.msra.mxu0 0.0
    %124 = vmatprep.subr.mxu0 0.0
    %125 = vmatpush1.msra.mxu0 0.0
    %126 = vmatprep.subr.mxu0 0.0
    %127 = vmatpush1.msra.mxu0 0.0
    %128 = vmatprep.subr.mxu0 0.0
    %129 = vmatpush1.msra.mxu0 0.0
    %130 = vmatprep.subr.mxu0 0.0
    %131 = vmatpush1.msra.mxu0 0.0
    %132 = vmatprep.subr.mxu0 0.0
    %133 = vmatpush1.msra.mxu0 0.0
    %134 = vmatprep.subr.mxu0 0.0
    %135 = vmatpush1.msra.mxu0 0.0
    %136 = vmatprep.subr.mxu0 0.0
    %137 = vmatpush1.msra.mxu0 0.0
    %138 = vmatprep.subr.mxu0 0.0
    %139 = vmatpush1.msra.mxu0 0.0
    %140 = vmatprep.subr.mxu0 0.0
    %141 = vmatpush1.msra.mxu0 0.0
    %142 = vmatprep.subr.mxu0 0.0
    %143 = vmatpush1.msra.mxu0 0.0
    %144 = vmatprep.subr.mxu0 0.0
    %145 = vmatpush1.msra.mxu0 0.0
    %146 = vmatprep.subr.mxu0 0.0
    %147 = vmatpush1.msra.mxu0 0.0
    %148 = vmatprep.subr.mxu0 0.0
    %149 = vmatpush1.msra.mxu0 0.0
    %150 = vmatprep.subr.mxu0 0.0
    %151 = vmatpush1.msra.mxu0 0.0
    %152 = vmatprep.mubr.f32.mxu0 0.0
    %153 = vmatmul.mubr.f32.gmra.mrb[0].mxu0 %v41
    %v154 = vpop.f32.mrb[0].mxu0
    %v155 = vadd.f32 %v37, %v154
    %v156 = vpop.f32.mrb[0].mxu0
    %157 = vmatprep.mubr.f32.mxu0 0.0
    %158 = vmatmul.mubr.f32.gmra.mrb[0].mxu0 %v44
    %v159 = vpop.f32.mrb[0].mxu0
    %v160 = vadd.f32 %v37, %v159
    %v161 = vpop.f32.mrb[0].mxu0
    %162 = vmatprep.mubr.f32.mxu0 0.0
    %163 = vmatmul.mubr.f32.gmra.mrb[0].mxu0 %v47
    %v164 = vpop.f32.mrb[0].mxu0
    %v165 = vadd.f32 %v37, %v164
    %v166 = vpop.f32.mrb[0].mxu0
    %167 = vmatprep.mubr.f32.mxu0 0.0
    %168 = vmatmul.mubr.f32.gmra.mrb[0].mxu0 %v50
    %v169 = vpop.f32.mrb[0].mxu0
    %v170 = vadd.f32 %v37, %v169
    %v171 = vpop.f32.mrb[0].mxu0
    %172 = vmatprep.mubr.f32.mxu0 0.0
    %173 = vmatmul.mubr.f32.gmra.mrb[0].mxu0 %v53
    %v174 = vpop.f32.mrb[0].mxu0
    %v175 = vadd.f32 %v37, %v174
    %v176 = vpop.f32.mrb[0].mxu0
    %177 = vmatprep.mubr.f32.mxu0 0.0
    %178 = vmatmul.mubr.f32.gmra.mrb[0].mxu0 %v56
    %v179 = vpop.f32.mrb[0].mxu0
    %v180 = vadd.f32 %v37, %v179
    %v181 = vpop.f32.mrb[0].mxu0
    %182 = vmatprep.mubr.f32.mxu0 0.0
    %183 = vmatmul.mubr.f32.gmra.mrb[0].mxu0 %v59
    %v184 = vpop.f32.mrb[0].mxu0
    %v185 = vadd.f32 %v37, %v184
    %v186 = vpop.f32.mrb[0].mxu0
    %187 = vmatprep.mubr.f32.mxu0 0.0
    %188 = vmatmul.mubr.f32.gmra.mrb[0].mxu0 %v62
    %v189 = vpop.f32.mrb[0].mxu0
    %v190 = vadd.f32 %v37, %v189
    %v191 = vpop.f32.mrb[0].mxu0
    %192 = vmatprep.mubr.f32.mxu0 0.0
    %193 = vmatmul.mubr.f32.gmra.mrb[0].mxu0 %v65
    %v194 = vpop.f32.mrb[0].mxu0
    %v195 = vadd.f32 %v37, %v194
    %v196 = vpop.f32.mrb[0].mxu0
    %197 = vmatprep.mubr.f32.mxu0 0.0
    %198 = vmatmul.mubr.f32.gmra.mrb[0].mxu0 %v68
    %v199 = vpop.f32.mrb[0].mxu0
    %v200 = vadd.f32 %v37, %v199
    %v201 = vpop.f32.mrb[0].mxu0
    %202 = vmatprep.mubr.f32.mxu0 0.0
    %203 = vmatmul.mubr.f32.gmra.mrb[0].mxu0 %v71
    %v204 = vpop.f32.mrb[0].mxu0
    %v205 = vadd.f32 %v37, %v204
    %v206 = vpop.f32.mrb[0].mxu0
    %207 = vmatprep.mubr.f32.mxu0 0.0
    %208 = vmatmul.mubr.f32.gmra.mrb[0].mxu0 %v74
    %v209 = vpop.f32.mrb[0].mxu0
    %v210 = vadd.f32 %v37, %v209
    %v211 = vpop.f32.mrb[0].mxu0
    %212 = vmatprep.mubr.f32.mxu0 0.0
    %213 = vmatmul.mubr.f32.gmra.mrb[0].mxu0 %v77
    %v214 = vpop.f32.mrb[0].mxu0
    %v215 = vadd.f32 %v37, %v214
    %v216 = vpop.f32.mrb[0].mxu0
    %217 = vmatprep.mubr.f32.mxu0 0.0
    %218 = vmatmul.mubr.f32.gmra.mrb[0].mxu0 %v80
    %v219 = vpop.f32.mrb[0].mxu0
    %v220 = vadd.f32 %v37, %v219
    %v221 = vpop.f32.mrb[0].mxu0
    %222 = vmatprep.mubr.f32.mxu0 0.0
    %223 = vmatmul.mubr.f32.gmra.mrb[0].mxu0 %v83
    %v224 = vpop.f32.mrb[0].mxu0
    %v225 = vadd.f32 %v37, %v224
    %v226 = vpop.f32.mrb[0].mxu0
    %227 = vmatprep.mubr.f32.mxu0 0.0
    %228 = vmatmul.mubr.f32.gmra.mrb[0].mxu0 %v86
    %v229 = vpop.f32.mrb[0].mxu0
    %v230 = vadd.f32 %v37, %v229
    %v231 = vpop.f32.mrb[0].mxu0
    %232 = vdwg.mxu0
    %233 = vst [vmem:[#allocation2] sm:$0xff] %v155
    %234 = vst [vmem:[#allocation2 + $0x8] sm:$0xff] %v160
    %235 = vst [vmem:[#allocation2 + $0x10] sm:$0xff] %v165
    %236 = vst [vmem:[#allocation2 + $0x18] sm:$0xff] %v170
    %237 = vst [vmem:[#allocation2 + $0x20] sm:$0xff] %v175
    %238 = vst [vmem:[#allocation2 + $0x28] sm:$0xff] %v180
    %239 = vst [vmem:[#allocation2 + $0x30] sm:$0xff] %v185
    %240 = vst [vmem:[#allocation2 + $0x38] sm:$0xff] %v190
    %241 = vst [vmem:[#allocation2 + $0x40] sm:$0xff] %v195
    %242 = vst [vmem:[#allocation2 + $0x48] sm:$0xff] %v200
    %243 = vst [vmem:[#allocation2 + $0x50] sm:$0xff] %v205
    %244 = vst [vmem:[#allocation2 + $0x58] sm:$0xff] %v210
    %245 = vst [vmem:[#allocation2 + $0x60] sm:$0xff] %v215
    %246 = vst [vmem:[#allocation2 + $0x68] sm:$0xff] %v220
    %247 = vst [vmem:[#allocation2 + $0x70] sm:$0xff] %v225
    %248 = vst [vmem:[#allocation2 + $0x78] sm:$0xff] %v230
    // Predicated region
    $region14: #{tpu_custom_call.1} parent=1 // pred_check
      _
    $region15: #{tpu_custom_call.1} parent=1 // pred_check_branch
      %250 = sbr.rel (0) target = $region17
    $region16: #{tpu_custom_call.1} parent=1 // pred_region
      %s252 = ssub.s32 2048, 2048
      %253 = vsyncadd [#allocation3], %s252
      %s254 = sshll.u32 [#allocation2], 4
      %s255 = int_to_ptr.vmem [resolvable:$true] %s254
      %260 = dma.vmem_to_hbm [thread:$0]  %s255, 2048, %s3, [#allocation3], 128, 128, 8
    $region17: #{tpu_custom_call.1} parent=1 // pred_fallthru
      _
    // Predicated region
    $region18: #{tpu_custom_call.1} parent=1 // pred_check
      _
    $region19: #{tpu_custom_call.1} parent=1 // pred_check_branch
      %262 = sbr.rel (0) target = $region21
    $region20: #{tpu_custom_call.1} parent=1 // pred_region
      %263 = dma.done [#allocation3], 2048
    $region21: #{tpu_custom_call.1} parent=1 // pred_fallthru
      _
    %264 = vsyncpa [#allocation3], 1

</llo_original>
